<compile_context>
chip_gen: v7x
topology: tpu7x:2x2x1
jax: 0.10.0
libtpu: 0.0.40
codegen_flags: <defaults>
</compile_context>

<pallas_src>
import functools

import jax
import jax.numpy as jnp
from jax import lax
from jax.experimental import pallas as pl
from jax.experimental.pallas import tpu as pltpu


# --------------------------------------------------------------------------- #
# Sizing helpers
# --------------------------------------------------------------------------- #
def _round_up(x, m):
    return ((x + m - 1) // m) * m


def _vmem_budget():
    """(working-set budget, vmem_limit_bytes), sized from this chip's VMEM.

    v5e/v6e (128 MiB physical)     -> ~64 MiB working-set, ~108 MiB limit.
    v7x    (64 MiB per TensorCore) -> ~32 MiB working-set, ~54 MiB limit.
    Falls back to the v7x numbers if the query is unavailable.
    """
    cap = 64 * 1024 * 1024
    try:
        info = pltpu.get_tpu_info()
        cap = int(getattr(info, "vmem_capacity_bytes", cap)) or cap
    except Exception:
        pass
    cap = max(cap, 32 * 1024 * 1024)
    budget = cap // 2
    limit = max(budget, int(cap * 0.85))
    return int(budget), int(limit)


def _choose_channel_tile(C, N, HW, itemsize, budget_bytes, min_grid_steps=4):
    """Channel tile for the fused single-pass path, or None if it can't fit.

    Padding-aware: HW is rounded up to the 128-lane multiple that VMEM will
    actually allocate.  The tile is capped so the grid keeps >= min_grid_steps
    steps whenever C allows (pipelining + v7x's two TensorCores).
    """
    sub = 8 if itemsize >= 4 else 16          # sublane multiple (f32 / bf16)
    hw_pad = _round_up(HW, 128)               # lane padding actually allocated
    per_channel_bytes = 4 * N * hw_pad * itemsize   # 2 x-bufs + 2 out-bufs
    tc_fit = int(budget_bytes // max(per_channel_bytes, 1))

    if C <= sub:
        # Tiny channel axis: block dim == full array dim is always legal.
        return C if tc_fit >= C else None
    if tc_fit < sub:
        return None                            # -> split-reduction fallback

    tc = (tc_fit // sub) * sub                 # biggest sublane multiple that fits
    if C >= 2 * sub:
        cap = max(sub, (pl.cdiv(C, min_grid_steps) // sub) * sub)
        tc = min(tc, cap)
    return min(tc, C)


def _split_tiles(C, N, HW, itemsize, budget_bytes):
    """(channel tile, HW tile) for the two-pass split-reduction path."""
    sub = 8 if itemsize >= 4 else 16
    tc = C if C <= sub else sub
    # The apply pass is the bigger one: x + out, each double-buffered.
    thw = (budget_bytes // max(4 * N * tc * itemsize, 1) // 128) * 128
    thw = max(128, min(thw, _round_up(HW, 128)))
    # TODO(synk): if even (N, sub, 128) exceeds VMEM (enormous N), tile N too.
    return tc, thw


# --------------------------------------------------------------------------- #
# Kernels
# --------------------------------------------------------------------------- #
def _mobn_fused_kernel(x_ref, bias_ref, rmean_ref, out_ref, new_rmean_ref, *,
                       momentum, inv_count):
    # x_ref: (N, TC, HW); bias/rmean/new_rmean: (TC, 1); out: (N, TC, HW)
    x = x_ref[...]
    # Two-stage per-channel mean, forced to f32 accumulation:
    # lane-axis (XLU) sum per sample, small VPU sum over batch, one scale.
    per_sample = jnp.sum(x.astype(jnp.float32), axis=2, keepdims=True)  # (N,TC,1)
    avg = jnp.sum(per_sample, axis=0) * inv_count                       # (TC,1) f32

    # Fold bias into the mean: one subtract per element instead of sub + add.
    shift = (avg - bias_ref[...].astype(jnp.float32)).astype(x.dtype)   # (TC,1)
    out_ref[...] = x - shift[None, :, :]                                # lane-dense

    new_rmean_ref[...] = (
        (1.0 - momentum) * rmean_ref[...].astype(jnp.float32) + momentum * avg
    ).astype(new_rmean_ref.dtype)


def _mobn_mean_kernel(x_ref, bias_ref, rmean_ref, shift_ref, new_rmean_ref,
                      acc_ref, *, momentum, inv_count, hw_total, thw, mask_tail):
    # Split-reduction pass 1: accumulate per-channel sums over HW tiles.
    # x_ref: (N, TC, THW); bias/rmean/shift/new_rmean: (TC,1); acc: (TC,1) f32
    hw_i = pl.program_id(1)

    @pl.when(hw_i == 0)
    def _():
        acc_ref[...] = jnp.zeros_like(acc_ref)

    x = x_ref[...].astype(jnp.float32)
    if mask_tail:
        # Zero the padded HW tail of the last block so it doesn't pollute the mean.
        lane = lax.broadcasted_iota(jnp.int32, x.shape, 2)
        x = jnp.where(hw_i * thw + lane < hw_total, x, 0.0)

    per_sample = jnp.sum(x, axis=2, keepdims=True)     # (N, TC, 1)
    acc_ref[...] += jnp.sum(per_sample, axis=0)        # (TC, 1)

    @pl.when(hw_i == pl.num_programs(1) - 1)
    def _():
        avg = acc_ref[...] * inv_count
        shift_ref[...] = avg - bias_ref[...].astype(jnp.float32)
        new_rmean_ref[...] = (
            (1.0 - momentum) * rmean_ref[...].astype(jnp.float32) + momentum * avg
        ).astype(new_rmean_ref.dtype)


def _mobn_apply_kernel(x_ref, shift_ref, out_ref):
    # Split-reduction pass 2: out = x - (avg - bias).
    shift = shift_ref[...].astype(out_ref.dtype)       # (TC, 1)
    out_ref[...] = x_ref[...] - shift[None, :, :]


# --------------------------------------------------------------------------- #
# Wrapper
# --------------------------------------------------------------------------- #
def mean_only_batchnorm(x, bias, running_mean, *, momentum=0.1,
                        vmem_budget_bytes=None):
    """Training-mode MeanOnlyBatchNorm forward.

    Args:
      x:            (N, C, H, W) float32 (NCHW, as in PyTorch)
      bias:         (C,)  float32
      running_mean: (C,)  float32
      vmem_budget_bytes: optional cap on the VMEM working-set budget
        (testing / tuning knob; default = generation-aware ~50% of VMEM).
    Returns:
      (output (N, C, H, W), new_running_mean (C,))
    """
    N, C, H, W = x.shape
    HW = H * W
    itemsize = x.dtype.itemsize

    # Glue: free, contiguous reshapes only (no transposes / extra HBM passes).
    x3d = x.reshape(N, C, HW)
    bias2d = bias.reshape(C, 1)
    rmean2d = running_mean.reshape(C, 1)

    budget, vmem_limit = _vmem_budget()
    if vmem_budget_bytes is not None:
        budget = min(budget, int(vmem_budget_bytes))

    momentum = float(momentum)
    inv_count = 1.0 / float(N * HW)
    compiler_1d = pltpu.CompilerParams(
        dimension_semantics=("parallel",), vmem_limit_bytes=vmem_limit)

    tc = _choose_channel_tile(C, N, HW, itemsize, budget)

    if tc is not None:
        # ------------------ Fused single-pass path ------------------------ #
        grid = (pl.cdiv(C, tc),)
        kernel = functools.partial(
            _mobn_fused_kernel, momentum=momentum, inv_count=inv_count)
        out3d, new_rmean2d = pl.pallas_call(
            kernel,
            out_shape=(
                jax.ShapeDtypeStruct((N, C, HW), x.dtype),
                jax.ShapeDtypeStruct((C, 1), running_mean.dtype),
            ),
            grid=grid,
            in_specs=[
                pl.BlockSpec((N, tc, HW), lambda i: (0, i, 0)),
                pl.BlockSpec((tc, 1), lambda i: (i, 0)),
                pl.BlockSpec((tc, 1), lambda i: (i, 0)),
            ],
            out_specs=(
                pl.BlockSpec((N, tc, HW), lambda i: (0, i, 0)),
                pl.BlockSpec((tc, 1), lambda i: (i, 0)),
            ),
            input_output_aliases={2: 1},   # running_mean -> new_running_mean
            compiler_params=compiler_1d,
            cost_estimate=pl.CostEstimate(
                flops=3 * N * C * HW,
                transcendentals=0,
                bytes_accessed=2 * N * C * HW * itemsize + 3 * C * itemsize),
        )(x3d, bias2d, rmean2d)
    else:
        # --------------- Split-reduction (two-pass) fallback -------------- #
        tc_s, thw = _split_tiles(C, N, HW, itemsize, budget)
        hw_tiles = pl.cdiv(HW, thw)
        mask_tail = (HW % thw) != 0
        grid2 = (pl.cdiv(C, tc_s), hw_tiles)
        compiler_red = pltpu.CompilerParams(
            dimension_semantics=("parallel", "arbitrary"),
            vmem_limit_bytes=vmem_limit)
        compiler_map = pltpu.CompilerParams(
            dimension_semantics=("parallel", "parallel"),
            vmem_limit_bytes=vmem_limit)

        mean_kernel = functools.partial(
            _mobn_mean_kernel, momentum=momentum, inv_count=inv_count,
            hw_total=HW, thw=thw, mask_tail=mask_tail)

        shift2d, new_rmean2d = pl.pallas_call(
            mean_kernel,
            out_shape=(
                jax.ShapeDtypeStruct((C, 1), jnp.float32),
                jax.ShapeDtypeStruct((C, 1), running_mean.dtype),
            ),
            grid=grid2,
            in_specs=[
                pl.BlockSpec((N, tc_s, thw), lambda c, h: (0, c, h)),
                pl.BlockSpec((tc_s, 1), lambda c, h: (c, 0)),
                pl.BlockSpec((tc_s, 1), lambda c, h: (c, 0)),
            ],
            out_specs=(
                pl.BlockSpec((tc_s, 1), lambda c, h: (c, 0)),
                pl.BlockSpec((tc_s, 1), lambda c, h: (c, 0)),
            ),
            scratch_shapes=[pltpu.VMEM((tc_s, 1), jnp.float32)],
            input_output_aliases={2: 1},
            compiler_params=compiler_red,
            cost_estimate=pl.CostEstimate(
                flops=N * C * HW,
                transcendentals=0,
                bytes_accessed=N * C * HW * itemsize + 3 * C * itemsize),
        )(x3d, bias2d, rmean2d)

        out3d = pl.pallas_call(
            _mobn_apply_kernel,
            out_shape=jax.ShapeDtypeStruct((N, C, HW), x.dtype),
            grid=grid2,
            in_specs=[
                pl.BlockSpec((N, tc_s, thw), lambda c, h: (0, c, h)),
                pl.BlockSpec((tc_s, 1), lambda c, h: (c, 0)),
            ],
            out_specs=pl.BlockSpec((N, tc_s, thw), lambda c, h: (0, c, h)),
            compiler_params=compiler_map,
            cost_estimate=pl.CostEstimate(
                flops=N * C * HW,
                transcendentals=0,
                bytes_accessed=2 * N * C * HW * itemsize + C * 4),
        )(x3d, shift2d)

    out = out3d.reshape(N, C, H, W)
    return out, new_rmean2d.reshape(C)


# --------------------------------------------------------------------------- #
# Self-test
# --------------------------------------------------------------------------- #
if __name__ == "__main__":
    momentum = 0.1
    keys = jax.random.split(jax.random.PRNGKey(0), 6)

    def reference(x, bias, rm):
        C = x.shape[1]
        avg = jnp.mean(jnp.mean(jnp.mean(x, axis=3), axis=2), axis=0)
        out = x - avg.reshape(1, C, 1, 1) + bias.reshape(1, C, 1, 1)
        new_rm = (1.0 - momentum) * rm + momentum * avg
        return out, new_rm

    # --- Test 1: fused single-pass path (common case) ------------------------
    N, C, H, W = 2, 4, 16, 16
    x = jax.random.normal(keys[0], (N, C, H, W), dtype=jnp.float32)
    bias = 0.01 * jax.random.normal(keys[1], (C,), dtype=jnp.float32)
    running_mean = 0.01 * jax.random.normal(keys[2], (C,), dtype=jnp.float32)

    out, new_rm = mean_only_batchnorm(x, bias, running_mean, momentum=momentum)
    out = jax.block_until_ready(out)
    new_rm = jax.block_until_ready(new_rm)
    out_ref, rm_ref = reference(x, bias, running_mean)
    assert jnp.allclose(out, out_ref, atol=1e-5, rtol=1e-5)
    assert jnp.allclose(new_rm, rm_ref, atol=1e-5, rtol=1e-5)

    # --- Test 2: split-reduction fallback ------------------------------------
    # A tiny VMEM budget forces the two-pass path; H=W=12 (HW=144) also
    # exercises the masked, padded HW tail and multiple HW tiles.
    N2, C2, H2, W2 = 2, 4, 12, 12
    x2 = jax.random.normal(keys[3], (N2, C2, H2, W2), dtype=jnp.float32)
    bias2 = 0.01 * jax.random.normal(keys[4], (C2,), dtype=jnp.float32)
    rm2 = 0.01 * jax.random.normal(keys[5], (C2,), dtype=jnp.float32)

    out2, new_rm2 = mean_only_batchnorm(
        x2, bias2, rm2, momentum=momentum, vmem_budget_bytes=16 * 1024)
    out2 = jax.block_until_ready(out2)
    new_rm2 = jax.block_until_ready(new_rm2)
    out2_ref, rm2_ref = reference(x2, bias2, rm2)
    assert jnp.allclose(out2, out2_ref, atol=1e-5, rtol=1e-5)
    assert jnp.allclose(new_rm2, rm2_ref, atol=1e-5, rtol=1e-5)

    print("KERNEL_OK")
</pallas_src>

<mosaic_0001>
module attributes {stable_mosaic.version = 11 : i64} {
  func.func @_mobn_fused_kernel(%arg0: i32, %arg1: memref<2x4x256xf32, #tpu.memory_space<vmem>>, %arg2: memref<4x1xf32, #tpu.memory_space<vmem>>, %arg3: memref<4x1xf32, #tpu.memory_space<vmem>>, %arg4: memref<2x4x256xf32, #tpu.memory_space<vmem>>, %arg5: memref<4x1xf32, #tpu.memory_space<vmem>>) attributes {dimension_semantics = [#tpu.dimension_semantics<parallel>], iteration_bounds = array<i64: 1>, scalar_prefetch = 0 : i64, scratch_operands = 0 : i64, tpu.core_type = #tpu.core_type<tc>, window_params = [{transform_indices = @transform_0, window_bounds = array<i64: 2, 4, 256>}, {transform_indices = @transform_1, window_bounds = array<i64: 4, 1>}, {transform_indices = @transform_2, window_bounds = array<i64: 4, 1>}, {transform_indices = @transform_3, window_bounds = array<i64: 2, 4, 256>}, {transform_indices = @transform_4, window_bounds = array<i64: 4, 1>}]} {
    %c0 = arith.constant 0 : index
    %c0_0 = arith.constant 0 : index
    %c0_1 = arith.constant 0 : index
    %0 = vector.load %arg1[%c0, %c0_0, %c0_1] : memref<2x4x256xf32, #tpu.memory_space<vmem>>, vector<2x4x256xf32>
    %cst = arith.constant dense<0.000000e+00> : vector<2x4xf32>
    %1 = vector.multi_reduction <add>, %0, %cst [2] : vector<2x4x256xf32> to vector<2x4xf32>
    %2 = vector.shape_cast %1 : vector<2x4xf32> to vector<2x4x1xf32>
    %cst_2 = arith.constant dense<0.000000e+00> : vector<4x1xf32>
    %3 = vector.multi_reduction <add>, %2, %cst_2 [0] : vector<2x4x1xf32> to vector<4x1xf32>
    %cst_3 = arith.constant 0.001953125 : f32
    %4 = vector.broadcast %cst_3 : f32 to vector<4x1xf32>
    %5 = arith.mulf %3, %4 : vector<4x1xf32>
    %c0_4 = arith.constant 0 : index
    %c0_5 = arith.constant 0 : index
    %6 = vector.load %arg2[%c0_4, %c0_5] : memref<4x1xf32, #tpu.memory_space<vmem>>, vector<4x1xf32>
    %7 = arith.subf %5, %6 : vector<4x1xf32>
    %8 = vector.shape_cast %7 : vector<4x1xf32> to vector<1x4x1xf32>
    %9 = vector.broadcast %8 : vector<1x4x1xf32> to vector<2x4x256xf32>
    %10 = arith.subf %0, %9 : vector<2x4x256xf32>
    %c0_6 = arith.constant 0 : index
    %c0_7 = arith.constant 0 : index
    %c0_8 = arith.constant 0 : index
    %11 = vector.load %arg4[%c0_6, %c0_7, %c0_8] : memref<2x4x256xf32, #tpu.memory_space<vmem>>, vector<2x4x256xf32>
    tpu.vector_store %arg4[%c0_6, %c0_7, %c0_8], %10 {strides = array<i32>} : memref<2x4x256xf32, #tpu.memory_space<vmem>>, vector<2x4x256xf32>,
    %c0_9 = arith.constant 0 : index
    %c0_10 = arith.constant 0 : index
    %12 = vector.load %arg3[%c0_9, %c0_10] : memref<4x1xf32, #tpu.memory_space<vmem>>, vector<4x1xf32>
    %cst_11 = arith.constant 0.899999976 : f32
    %13 = vector.broadcast %cst_11 : f32 to vector<4x1xf32>
    %14 = arith.mulf %13, %12 : vector<4x1xf32>
    %cst_12 = arith.constant 1.000000e-01 : f32
    %15 = vector.broadcast %cst_12 : f32 to vector<4x1xf32>
    %16 = arith.mulf %15, %5 : vector<4x1xf32>
    %17 = arith.addf %14, %16 : vector<4x1xf32>
    %c0_13 = arith.constant 0 : index
    %c0_14 = arith.constant 0 : index
    %18 = vector.load %arg5[%c0_13, %c0_14] : memref<4x1xf32, #tpu.memory_space<vmem>>, vector<4x1xf32>
    tpu.vector_store %arg5[%c0_13, %c0_14], %17 {strides = array<i32>} : memref<4x1xf32, #tpu.memory_space<vmem>>, vector<4x1xf32>,
    return
  }
  func.func @transform_0(%arg0: i32) -> (i32, i32, i32) {
    %c0_i32 = arith.constant 0 : i32
    %c0_i32_0 = arith.constant 0 : i32
    %c0_i32_1 = arith.constant 0 : i32
    return %c0_i32, %arg0, %c0_i32_0 : i32, i32, i32
  }
  func.func @transform_1(%arg0: i32) -> (i32, i32) {
    %c0_i32 = arith.constant 0 : i32
    %c0_i32_0 = arith.constant 0 : i32
    return %arg0, %c0_i32 : i32, i32
  }
  func.func @transform_2(%arg0: i32) -> (i32, i32) {
    %c0_i32 = arith.constant 0 : i32
    %c0_i32_0 = arith.constant 0 : i32
    return %arg0, %c0_i32 : i32, i32
  }
  func.func @transform_3(%arg0: i32) -> (i32, i32, i32) {
    %c0_i32 = arith.constant 0 : i32
    %c0_i32_0 = arith.constant 0 : i32
    %c0_i32_1 = arith.constant 0 : i32
    return %c0_i32, %arg0, %c0_i32_0 : i32, i32, i32
  }
  func.func @transform_4(%arg0: i32) -> (i32, i32) {
    %c0_i32 = arith.constant 0 : i32
    %c0_i32_0 = arith.constant 0 : i32
    return %arg0, %c0_i32 : i32, i32
  }
}

</mosaic_0001>

<llo_original>
// kernel: tpu_custom_call.1
$region0: #{tpu_custom_call.1}
  #allocation0 [shape = 'u32[]', space=smem, size = 0x4, offset = 0x4, fixed_abs, tag = 'smem constant byte address 0x4 - core index']
  #allocation1 [shape = 'u32[144,128]{1,0:T(1,128)}', space=vmem, size = 0x12000, scoped, tag = 'internal scratch']
  %s0 = inlined_call_operand.hbm [shape: f32[2,4,256], index: 0, kind: input, shape index: {}]
  %s1 = inlined_call_operand.vmem [shape: f32[4,1], index: 1, kind: input, shape index: {}]
  %s2 = inlined_call_operand.vmem [shape: f32[4,1], index: 2, kind: input, shape index: {}, may-alias: {2,4}]
  %s3 = inlined_call_operand.hbm [shape: f32[2,4,256], index: 3, kind: output, shape index: {0}]
  %s4 = inlined_call_operand.vmem [shape: f32[4,1], index: 4, kind: output, shape index: {1}, may-alias: {2,4}]
  %5 = xla_tuple %s3, %s4
  %s6 = sld [smem:[#allocation0]]
  $region34: #{tpu_custom_call.1} parent=0
    _
  %s8 = ssub.s32 1, %s6
  %s9 = scalar_select 0, %s8, %s6
  $region1: #{tpu_custom_call.1} parent=0
    #allocation2 [shape = 'u8[8192]{0}', space=vmem, size = 0x2000, scoped, tag = 'input window, operand 0, single buffered']
    #allocation3 [shape = 's32[1]{0}', space=sflag, size = 0x4, scoped, tag = 'scoped memory for tpu_custom_call.1']
    #allocation4 [shape = 's32[1]{0}', space=sflag, size = 0x4, scoped, tag = 'scoped memory for tpu_custom_call.1']
    #allocation5 [shape = 'u8[8192]{0}', space=vmem, size = 0x2000, scoped, tag = 'output window, operand 0, single buffered']
    %10 = vsyncpa [#allocation3], 0
    %11 = vsyncpa [#allocation4], 0
    // Predicated region
    $region2: #{tpu_custom_call.1} parent=1 // pred_check
      _
    $region3: #{tpu_custom_call.1} parent=1 // pred_check_branch
      %13 = sbr.rel (0) target = $region5
    $region4: #{tpu_custom_call.1} parent=1 // pred_region
      %s15 = ssub.s32 256, 256
      %16 = vsyncadd [#allocation3], %s15
      %s17 = sshll.u32 [#allocation2], 4
      %s18 = int_to_ptr.vmem [resolvable:$true] %s17
      %23 = dma.hbm_to_vmem [thread:$0]  %s0, 256, %s18, [#allocation3], 128, 128, 8
    $region5: #{tpu_custom_call.1} parent=1 // pred_fallthru
      _
    // Predicated region
    $region6: #{tpu_custom_call.1} parent=1 // pred_check
      _
    $region7: #{tpu_custom_call.1} parent=1 // pred_check_branch
      %25 = sbr.rel (0) target = $region9
    $region8: #{tpu_custom_call.1} parent=1 // pred_region
      _
    $region9: #{tpu_custom_call.1} parent=1 // pred_fallthru
      _
    // Predicated region
    $region10: #{tpu_custom_call.1} parent=1 // pred_check
      _
    $region11: #{tpu_custom_call.1} parent=1 // pred_check_branch
      %27 = sbr.rel (0) target = $region13
    $region12: #{tpu_custom_call.1} parent=1 // pred_region
      _
    $region13: #{tpu_custom_call.1} parent=1 // pred_fallthru
      _
    // Predicated region
    $region14: #{tpu_custom_call.1} parent=1 // pred_check
      _
    $region15: #{tpu_custom_call.1} parent=1 // pred_check_branch
      %29 = sbr.rel (0) target = $region17
    $region16: #{tpu_custom_call.1} parent=1 // pred_region
      %30 = dma.done [#allocation3], 256
    $region17: #{tpu_custom_call.1} parent=1 // pred_fallthru
      _
    %v31 = vld [vmem:[#allocation2] sm:$0xff]
    %v32 = vld [vmem:[#allocation2 + $0x8] sm:$0xff]
    %v35 = vcombine.high %v31, %v31
    %v36 = vcombine.high %v32, %v32
    %vm39 = vcmask 1043456
    %v40 = vsel %vm39, %v31, 0.0
    %v41 = vsel %vm39, %v35, 0.0
    %v42 = vadd.f32 %v40, %v41
    %43 = vadd.xlane.f32.xlu0 %v42
    %v44 = vpop.xlane.xlu0 %43
    %v45 = vsel %vm39, %v32, 0.0
    %v46 = vsel %vm39, %v36, 0.0
    %v47 = vadd.f32 %v45, %v46
    %48 = vadd.xlane.f32.xlu0 %v47
    %v49 = vpop.xlane.xlu0 %48
    %v50 = vsel %vm39, %v44, 0.0
    %v51 = vsel %vm39, %v49, 0.0
    %v52 = vadd.f32 %v50, %v51
    %v53 = vmul.f32 %v52, 0.001953125
    %v54 = vld [vmem:[%s1] sm:$0xf]
    %v55 = vsub.f32 %v53, %v54
    %57 = vset.pattern.permute.xlu0 0
    %58 = vperm.xlu0 %57, %v55
    %v59 = vpop.permute.xlu0 %58
    %v61 = vunpack.c.l.s4 839922192
    %v62 = vunpack.c.0.s8 %v61
    %v63 = vlaneseq
    %v64 = vshrl.u32 %v63, 7
    %v65 = vsub.s32 %v62, %v64
    %v66 = vrot.slane %v59, %v65
    %v68 = vsub.f32 %v31, %v66
    %v69 = vsub.f32 %v32, %v66
    %70 = vst [vmem:[#allocation5] sm:$0xff] %v68
    %71 = vst [vmem:[#allocation5 + $0x8] sm:$0xff] %v69
    %v72 = vld [vmem:[%s2] sm:$0xf]
    %v73 = vmul.f32 %v72, 0.9
    %v74 = vmul.f32 %v53, 0.1
    %v75 = vadd.f32 %v73, %v74
    %vm76 = vcmask 3072
    %77 = vst.msk [vmem:[%s4] sm:$0xf] %vm76, %v75
    // Predicated region
    $region18: #{tpu_custom_call.1} parent=1 // pred_check
      _
    $region19: #{tpu_custom_call.1} parent=1 // pred_check_branch
      %79 = sbr.rel (0) target = $region21
    $region20: #{tpu_custom_call.1} parent=1 // pred_region
      %s81 = ssub.s32 256, 256
      %82 = vsyncadd [#allocation4], %s81
      %s83 = sshll.u32 [#allocation5], 4
      %s84 = int_to_ptr.vmem [resolvable:$true] %s83
      %89 = dma.vmem_to_hbm [thread:$0]  %s84, 256, %s3, [#allocation4], 128, 128, 8
    $region21: #{tpu_custom_call.1} parent=1 // pred_fallthru
      _
    // Predicated region
    $region22: #{tpu_custom_call.1} parent=1 // pred_check
      _
    $region23: #{tpu_custom_call.1} parent=1 // pred_check_branch
      %91 = sbr.rel (0) target = $region25
    $region24: #{tpu_custom_call.1} parent=1 // pred_region
      _
    $region25: #{tpu_custom_call.1} parent=1 // pred_fallthru
      _
    // Predicated region
    $region26: #{tpu_custom_call.1} parent=1 // pred_check
      _
    $region27: #{tpu_custom_call.1} parent=1 // pred_check_branch
      %93 = sbr.rel (0) target = $region29
    $region28: #{tpu_custom_call.1} parent=1 // pred_region
      %94 = dma.done [#allocation4], 256
    $region29: #{tpu_custom_call.1} parent=1 // pred_fallthru
      _
    // Predicated region
    $region30: #{tpu_custom_call.1} parent=1 // pred_check
      _
    $region31: #{tpu_custom_call.1} parent=1 // pred_check_branch
      %96 = sbr.rel (0) target = $region33
    $region32: #{tpu_custom_call.1} parent=1 // pred_region
      _
    $region33: #{tpu_custom_call.1} parent=1 // pred_fallthru
      _
    %97 = vsyncpa [#allocation3], 1
    %98 = vsyncpa [#allocation4], 1

</llo_original>
